<compile_context>
chip_gen: v6e
topology: v6e:2x2x1
jax: 0.10.0
libtpu: 0.0.40
codegen_flags: <defaults>
</compile_context>

<pallas_src>
import functools

import jax
import jax.numpy as jnp
from jax.experimental import pallas as pl
from jax.experimental.pallas import tpu as pltpu


_LANE = 128
_VMEM_LIMIT_BYTES = 32 * 1024 * 1024   # safe scoped limit on v5e/v6e/v7x
_HW_TILE_TARGET = 512                  # lane-dense tile width for the 2-pass path


def _round_up(x, m):
    return ((x + m - 1) // m) * m


# ----------------------------------------------------------------------------
# Fused one-pass kernel: whole (padded) image per block, grid over batch.
# ----------------------------------------------------------------------------
def _arm_fused_kernel(x_ref, wt_ref, b_ref, o_ref):
    # x_ref: (1, C, HW_pad) native dtype; wt_ref: (C, C) f32 = (w / HW).T
    # b_ref: (1, C) f32; o_ref: (1, C, HW_pad) native dtype
    pooled = jnp.sum(x_ref[...], axis=-1, dtype=jnp.float32)          # (1, C)
    logits = jnp.dot(pooled, wt_ref[...],
                     preferred_element_type=jnp.float32) + b_ref[...]  # (1, C)
    attn = jax.nn.sigmoid(logits)                                      # (1, C)
    o_ref[...] = x_ref[...] * attn[:, :, None].astype(o_ref.dtype)


# ----------------------------------------------------------------------------
# Two-pass path.
# Pass 1: pooled-sum accumulated across HW tiles -> conv1x1 -> sigmoid.
# ----------------------------------------------------------------------------
def _arm_attn_kernel(x_ref, wt_ref, b_ref, attn_ref, acc_ref):
    # x_ref: (1, C, hw_tile); wt_ref: (C, C) f32; b_ref: (1, C) f32
    # attn_ref: (1, C, 1) f32 output; acc_ref: (1, C) f32 scratch
    h = pl.program_id(1)

    @pl.when(h == 0)
    def _():
        acc_ref[...] = jnp.zeros_like(acc_ref)

    acc_ref[...] += jnp.sum(x_ref[...], axis=-1, dtype=jnp.float32)

    @pl.when(h == pl.num_programs(1) - 1)
    def _():
        logits = jnp.dot(acc_ref[...], wt_ref[...],
                         preferred_element_type=jnp.float32) + b_ref[...]
        attn_ref[...] = jax.nn.sigmoid(logits)[:, :, None]


# Pass 2: lane-dense broadcast multiply, fully parallel grid.
def _arm_scale_kernel(x_ref, attn_ref, o_ref):
    # x_ref/o_ref: (1, C, hw_tile); attn_ref: (1, C, 1) f32
    o_ref[...] = x_ref[...] * attn_ref[...].astype(o_ref.dtype)


# ----------------------------------------------------------------------------
# Wrapper
# ----------------------------------------------------------------------------
def attention_refinement_module(x, w, b, *, force_two_pass=False):
    """x: (N, C, H, W); w: (C_out, C_in) 1x1-conv weight; b: (C_out,)."""
    N, C, H, W = x.shape
    C_out, C_in = w.shape
    assert C_in == C, "in_channels mismatch"
    assert C_out == C, "broadcast multiply requires out_channels == in_channels"
    HW = H * W
    itemsize = jnp.dtype(x.dtype).itemsize

    # Lane-dense padding of the spatial axis.
    hw_tile = min(_HW_TILE_TARGET, _round_up(HW, _LANE))
    HW_pad = _round_up(HW, hw_tile)

    x_flat = x.reshape(N, C, HW)
    if HW_pad != HW:
        x_flat = jnp.pad(x_flat, ((0, 0), (0, 0), (0, HW_pad - HW)))

    # Fold the 1/HW mean scale into the pre-transposed weight (done once, in XLA).
    wt = (w.astype(jnp.float32) / float(HW)).T          # (C_in, C_out)
    b2d = b.astype(jnp.float32).reshape(1, C_out)

    bytes_rw = 2 * N * C * HW_pad * itemsize
    # Fused-path VMEM budget: double-buffered input + output tiles + weights.
    fused_vmem = 4 * C * HW_pad * itemsize + 2 * C * C * 4 + 2 * C * 4
    use_fused = (not force_two_pass) and (fused_vmem <= _VMEM_LIMIT_BYTES // 2)

    if use_fused:
        out_flat = pl.pallas_call(
            _arm_fused_kernel,
            out_shape=jax.ShapeDtypeStruct((N, C, HW_pad), x.dtype),
            grid_spec=pltpu.PrefetchScalarGridSpec(
                num_scalar_prefetch=0,
                grid=(N,),
                in_specs=[
                    pl.BlockSpec((1, C, HW_pad), lambda n: (n, 0, 0)),
                    pl.BlockSpec((C, C), lambda n: (0, 0)),
                    pl.BlockSpec((1, C), lambda n: (0, 0)),
                ],
                out_specs=pl.BlockSpec((1, C, HW_pad), lambda n: (n, 0, 0)),
            ),
            compiler_params=pltpu.CompilerParams(
                dimension_semantics=("parallel",),
                vmem_limit_bytes=_VMEM_LIMIT_BYTES),
            cost_estimate=pl.CostEstimate(
                flops=2 * N * C * C + N * C * HW_pad,
                transcendentals=N * C,
                bytes_accessed=bytes_rw),
        )(x_flat, wt, b2d)
    else:
        num_hw = HW_pad // hw_tile

        # Pass 1: global-avg-pool (as f32 sum) -> 1x1 conv -> sigmoid.
        attn = pl.pallas_call(
            _arm_attn_kernel,
            out_shape=jax.ShapeDtypeStruct((N, C, 1), jnp.float32),
            grid_spec=pltpu.PrefetchScalarGridSpec(
                num_scalar_prefetch=0,
                grid=(N, num_hw),
                in_specs=[
                    pl.BlockSpec((1, C, hw_tile), lambda n, h: (n, 0, h)),
                    pl.BlockSpec((C, C), lambda n, h: (0, 0)),
                    pl.BlockSpec((1, C), lambda n, h: (0, 0)),
                ],
                out_specs=pl.BlockSpec((1, C, 1), lambda n, h: (n, 0, 0)),
                scratch_shapes=[pltpu.VMEM((1, C), jnp.float32)],
            ),
            compiler_params=pltpu.CompilerParams(
                dimension_semantics=("parallel", "arbitrary"),
                vmem_limit_bytes=_VMEM_LIMIT_BYTES),
            cost_estimate=pl.CostEstimate(
                flops=2 * N * C * C + N * C * HW_pad,
                transcendentals=N * C,
                bytes_accessed=N * C * HW_pad * itemsize + N * C * 4),
        )(x_flat, wt, b2d)

        # Pass 2: broadcast multiply, tiled (N, HW-tiles), all axes parallel.
        out_flat = pl.pallas_call(
            _arm_scale_kernel,
            out_shape=jax.ShapeDtypeStruct((N, C, HW_pad), x.dtype),
            grid_spec=pltpu.PrefetchScalarGridSpec(
                num_scalar_prefetch=0,
                grid=(N, num_hw),
                in_specs=[
                    pl.BlockSpec((1, C, hw_tile), lambda n, h: (n, 0, h)),
                    pl.BlockSpec((1, C, 1), lambda n, h: (n, 0, 0)),
                ],
                out_specs=pl.BlockSpec((1, C, hw_tile), lambda n, h: (n, 0, h)),
            ),
            compiler_params=pltpu.CompilerParams(
                dimension_semantics=("parallel", "parallel"),
                vmem_limit_bytes=_VMEM_LIMIT_BYTES),
            cost_estimate=pl.CostEstimate(
                flops=N * C * HW_pad,
                transcendentals=0,
                bytes_accessed=bytes_rw + N * C * 4),
        )(x_flat, attn)

    if HW_pad != HW:
        out_flat = out_flat[:, :, :HW]
    return out_flat.reshape(N, C, H, W)


def _reference(x, w, b):
    pooled = jnp.mean(x.astype(jnp.float32), axis=(2, 3))       # (N, C)
    logits = pooled @ w.astype(jnp.float32).T + b[None, :]      # (N, C)
    attn = jax.nn.sigmoid(logits)[:, :, None, None]             # (N, C, 1, 1)
    return (x.astype(jnp.float32) * attn).astype(x.dtype)


if __name__ == "__main__":
    key = jax.random.PRNGKey(0)
    k_x, k_w, k_b, k_x2 = jax.random.split(key, 4)

    # Case 1: small shape -> fused one-pass path (whole image per block).
    N, C, H, W = 2, 4, 16, 16
    x = jax.random.normal(k_x, (N, C, H, W), dtype=jnp.float32)
    w = jax.random.normal(k_w, (C, C), dtype=jnp.float32) * 0.1
    b = jax.random.normal(k_b, (C,), dtype=jnp.float32) * 0.1

    out = jax.block_until_ready(attention_refinement_module(x, w, b))
    ref = _reference(x, w, b)
    assert out.shape == (N, C, H, W)
    assert jnp.allclose(out, ref, atol=1e-5, rtol=1e-5), "fused path mismatch"

    # Case 2: same inputs through the two-pass (pool -> scale) path.
    out2 = jax.block_until_ready(
        attention_refinement_module(x, w, b, force_two_pass=True))
    assert jnp.allclose(out2, ref, atol=1e-5, rtol=1e-5), "two-pass mismatch"

    # Case 3: two-pass with HW not a multiple of 128 (exercises lane padding)
    # and multiple HW tiles per image (exercises the f32 accumulator).
    N3, C3, H3, W3 = 1, 8, 24, 24
    x3 = jax.random.normal(k_x2, (N3, C3, H3, W3), dtype=jnp.float32)
    w3 = jax.random.normal(k_w, (C3, C3), dtype=jnp.float32) * 0.1
    b3 = jax.random.normal(k_b, (C3,), dtype=jnp.float32) * 0.1
    out3 = jax.block_until_ready(
        attention_refinement_module(x3, w3, b3, force_two_pass=True))
    ref3 = _reference(x3, w3, b3)
    assert jnp.allclose(out3, ref3, atol=1e-5, rtol=1e-5), "padded two-pass mismatch"

    print("KERNEL_OK")
</pallas_src>

<mosaic_0001>
module attributes {stable_mosaic.version = 11 : i64} {
  func.func @_arm_fused_kernel(%arg0: i32, %arg1: memref<1x4x256xf32, #tpu.memory_space<vmem>>, %arg2: memref<4x4xf32, #tpu.memory_space<vmem>>, %arg3: memref<1x4xf32, #tpu.memory_space<vmem>>, %arg4: memref<1x4x256xf32, #tpu.memory_space<vmem>>) attributes {dimension_semantics = [#tpu.dimension_semantics<parallel>], iteration_bounds = array<i64: 2>, scalar_prefetch = 0 : i64, scratch_operands = 0 : i64, tpu.core_type = #tpu.core_type<tc>, window_params = [{transform_indices = @transform_0, window_bounds = array<i64: 1, 4, 256>}, {pipeline_mode = #tpu.pipeline_mode<synchronous>, transform_indices = @transform_1, window_bounds = array<i64: 4, 4>}, {pipeline_mode = #tpu.pipeline_mode<synchronous>, transform_indices = @transform_2, window_bounds = array<i64: 1, 4>}, {transform_indices = @transform_3, window_bounds = array<i64: 1, 4, 256>}]} {
    %c0 = arith.constant 0 : index
    %c0_0 = arith.constant 0 : index
    %c0_1 = arith.constant 0 : index
    %0 = vector.load %arg1[%c0, %c0_0, %c0_1] : memref<1x4x256xf32, #tpu.memory_space<vmem>>, vector<1x4x256xf32>
    %cst = arith.constant dense<0.000000e+00> : vector<1x4xf32>
    %1 = vector.multi_reduction <add>, %0, %cst [2] : vector<1x4x256xf32> to vector<1x4xf32>
    %c0_2 = arith.constant 0 : index
    %c0_3 = arith.constant 0 : index
    %2 = vector.load %arg2[%c0_2, %c0_3] : memref<4x4xf32, #tpu.memory_space<vmem>>, vector<4x4xf32>
    %cst_4 = arith.constant dense<0.000000e+00> : vector<1x4xf32>
    %3 = tpu.matmul %1, %2, %cst_4 {dimension_numbers = #tpu.dot_dimension_numbers<[1], [0], [0], [1], [0, 0, 1, 1], [], []>} : vector<1x4xf32>, vector<4x4xf32>, vector<1x4xf32> -> vector<1x4xf32>
    %c0_5 = arith.constant 0 : index
    %c0_6 = arith.constant 0 : index
    %4 = vector.load %arg3[%c0_5, %c0_6] : memref<1x4xf32, #tpu.memory_space<vmem>>, vector<1x4xf32>
    %5 = arith.addf %3, %4 : vector<1x4xf32>
    %6 = arith.negf %5 : vector<1x4xf32>
    %7 = math.exp %6 : vector<1x4xf32>
    %cst_7 = arith.constant 1.000000e+00 : f32
    %8 = vector.broadcast %cst_7 : f32 to vector<1x4xf32>
    %9 = arith.addf %8, %7 : vector<1x4xf32>
    %10 = arith.divf %8, %9 : vector<1x4xf32>
    %c0_8 = arith.constant 0 : index
    %c0_9 = arith.constant 0 : index
    %c0_10 = arith.constant 0 : index
    %11 = vector.load %arg1[%c0_8, %c0_9, %c0_10] : memref<1x4x256xf32, #tpu.memory_space<vmem>>, vector<1x4x256xf32>
    %12 = vector.shape_cast %10 : vector<1x4xf32> to vector<1x4x1xf32>
    %13 = vector.broadcast %12 : vector<1x4x1xf32> to vector<1x4x256xf32>
    %14 = arith.mulf %11, %13 : vector<1x4x256xf32>
    %c0_11 = arith.constant 0 : index
    %c0_12 = arith.constant 0 : index
    %c0_13 = arith.constant 0 : index
    %15 = vector.load %arg4[%c0_11, %c0_12, %c0_13] : memref<1x4x256xf32, #tpu.memory_space<vmem>>, vector<1x4x256xf32>
    tpu.vector_store %arg4[%c0_11, %c0_12, %c0_13], %14 {strides = array<i32>} : memref<1x4x256xf32, #tpu.memory_space<vmem>>, vector<1x4x256xf32>,
    return
  }
  func.func @transform_0(%arg0: i32) -> (i32, i32, i32) {
    %c0_i32 = arith.constant 0 : i32
    %c0_i32_0 = arith.constant 0 : i32
    %c0_i32_1 = arith.constant 0 : i32
    return %arg0, %c0_i32, %c0_i32_0 : i32, i32, i32
  }
  func.func @transform_1(%arg0: i32) -> (i32, i32) {
    %c0_i32 = arith.constant 0 : i32
    %c0_i32_0 = arith.constant 0 : i32
    %c0_i32_1 = arith.constant 0 : i32
    return %c0_i32, %c0_i32_0 : i32, i32
  }
  func.func @transform_2(%arg0: i32) -> (i32, i32) {
    %c0_i32 = arith.constant 0 : i32
    %c0_i32_0 = arith.constant 0 : i32
    %c0_i32_1 = arith.constant 0 : i32
    return %c0_i32, %c0_i32_0 : i32, i32
  }
  func.func @transform_3(%arg0: i32) -> (i32, i32, i32) {
    %c0_i32 = arith.constant 0 : i32
    %c0_i32_0 = arith.constant 0 : i32
    %c0_i32_1 = arith.constant 0 : i32
    return %arg0, %c0_i32, %c0_i32_0 : i32, i32, i32
  }
}

</mosaic_0001>

<llo_original>
// kernel: tpu_custom_call.1
$region0: #{tpu_custom_call.1}
  #allocation0 [shape = 'u32[]', space=smem, size = 0x4, offset = 0x4, fixed_abs, tag = 'smem constant byte address 0x4 - core index']
  #allocation1 [shape = 'u32[144,128]{1,0:T(1,128)}', space=vmem, size = 0x12000, scoped, tag = 'internal scratch']
  %s0 = inlined_call_operand.hbm [shape: f32[2,4,256], index: 0, kind: input, shape index: {}]
  %s1 = inlined_call_operand.hbm [shape: f32[4,4], index: 1, kind: input, shape index: {}]
  %s2 = inlined_call_operand.vmem [shape: f32[1,4], index: 2, kind: input, shape index: {}]
  %s3 = inlined_call_operand.hbm [shape: f32[2,4,256], index: 3, kind: output, shape index: {}]
  %s4 = sld [smem:[#allocation0]]
  $region53: #{tpu_custom_call.1} parent=0
    _
  %s6 = ssub.s32 1, %s4
  %s7 = scalar_select 0, %s6, %s4
  $region1: #{tpu_custom_call.1} parent=0
    #allocation2 [shape = 'u8[8192]{0}', space=vmem, size = 0x2000, scoped, tag = 'input window, operand 0']
    #allocation3 [shape = 's32[2]{0}', space=sflag, size = 0x8, scoped, tag = 'scoped memory for tpu_custom_call.1']
    #allocation4 [shape = 's32[2]{0}', space=sflag, size = 0x8, scoped, tag = 'scoped memory for tpu_custom_call.1']
    #allocation5 [shape = 'u8[2048]{0}', space=vmem, size = 0x800, scoped, tag = 'input window, operand 1, single buffered']
    #allocation6 [shape = 's32[1]{0}', space=sflag, size = 0x4, scoped, tag = 'scoped memory for tpu_custom_call.1']
    #allocation7 [shape = 'u8[8192]{0}', space=vmem, size = 0x2000, scoped, tag = 'output window, operand 0']
    %8 = vsyncpa [#allocation3], 0
    %s9 = scalar_lea.sflag [#allocation3], 1
    %10 = vsyncpa %s9, 0
    %11 = vsyncpa [#allocation6], 0
    %12 = vsyncpa [#allocation4], 0
    %s13 = scalar_lea.sflag [#allocation4], 1
    %14 = vsyncpa %s13, 0
    loop: start=0, step=1, limit=4
    $region2: #{tpu_custom_call.1} parent=1 // loop_pre_header
      _
    $region3: #{tpu_custom_call.1} parent=1 // loop_header
      %s16 = sphi 0, %s20
      %p17 = scmp.ge.s32.totalorder %s16, 4
      %s26 = sphi 0, %s28
      %s29 = sphi 0, %s26
      %s30 = sphi 0, %s29
      %s46 = sphi 0, %s30
      %s50 = sphi 0, %s50
      %s52 = sphi 0, %s50
      %s53 = sphi 0, %s52
      %s67 = sphi 0, %s53
      %s71 = sphi 0, %s71
      %s73 = sphi 0, %s71
      %s74 = sphi 0, %s73
      %s88 = sphi 0, %s74
      %s94 = sphi 0, %s96
      %s97 = sphi 0, %s94
      %s98 = sphi 0, %s97
      %s114 = sphi 0, %s98
    $region4: #{tpu_custom_call.1} parent=1 // loop_header_branch
      %19 = sbr.rel (%p17) target = $region8
    $region5: #{tpu_custom_call.1} parent=1 // loop_body
      %s21 = ssub.s32 %s16, 1
      %s22 = ssub.s32 %s16, 2
      %s23 = sadd.s32 %s16, 1
      %s24 = ssub.s32 %s16, %s23
      %p25 = scmp.eq.s32.totalorder %s24, 0
      %s27 = sadd.s32 %s26, 1
      %s28 = scalar_select %p25, %s26, %s27
      %p31 = pneg %p25
      %p32 = scmp.eq.s32.totalorder %s16, 1
      %p33 = por %p31, %p32
      %p34 = scmp.ne.s32.totalorder %s26, %s29
      %p35 = scmp.eq.s32.totalorder %s16, 0
      %p36 = por %p34, %p35
      %p37 = scmp.ne.s32.totalorder %s26, %s29
      %p38 = scmp.eq.s32.totalorder %s21, 1
      %p39 = por %p37, %p38
      %p40 = scmp.ne.s32.totalorder %s29, %s30
      %p41 = scmp.eq.s32.totalorder %s21, 0
      %p42 = por %p40, %p41
      %p43 = scmp.ne.s32.totalorder %s29, %s30
      %p44 = scmp.eq.s32.totalorder %s22, 1
      %p45 = por %p43, %p44
      %p47 = scmp.ne.s32.totalorder %s30, %s46
      %p48 = scmp.eq.s32.totalorder %s22, 0
      %p49 = por %p47, %p48
      %s51 = sadd.s32 %s50, 1
      %p54 = scmp.eq.s32.totalorder %s16, 1
      %p55 = scmp.ne.s32.totalorder %s50, %s52
      %p56 = scmp.eq.s32.totalorder %s16, 0
      %p57 = por %p55, %p56
      %p58 = scmp.ne.s32.totalorder %s50, %s52
      %p59 = scmp.eq.s32.totalorder %s21, 1
      %p60 = por %p58, %p59
      %p61 = scmp.ne.s32.totalorder %s52, %s53
      %p62 = scmp.eq.s32.totalorder %s21, 0
      %p63 = por %p61, %p62
      %p64 = scmp.ne.s32.totalorder %s52, %s53
      %p65 = scmp.eq.s32.totalorder %s22, 1
      %p66 = por %p64, %p65
      %p68 = scmp.ne.s32.totalorder %s53, %s67
      %p69 = scmp.eq.s32.totalorder %s22, 0
      %p70 = por %p68, %p69
      %s72 = sadd.s32 %s71, 1
      %p75 = scmp.eq.s32.totalorder %s16, 1
      %p76 = scmp.ne.s32.totalorder %s71, %s73
      %p77 = scmp.eq.s32.totalorder %s16, 0
      %p78 = por %p76, %p77
      %p79 = scmp.ne.s32.totalorder %s71, %s73
      %p80 = scmp.eq.s32.totalorder %s21, 1
      %p81 = por %p79, %p80
      %p82 = scmp.ne.s32.totalorder %s73, %s74
      %p83 = scmp.eq.s32.totalorder %s21, 0
      %p84 = por %p82, %p83
      %p85 = scmp.ne.s32.totalorder %s73, %s74
      %p86 = scmp.eq.s32.totalorder %s22, 1
      %p87 = por %p85, %p86
      %p89 = scmp.ne.s32.totalorder %s74, %s88
      %p90 = scmp.eq.s32.totalorder %s22, 0
      %p91 = por %p89, %p90
      %s92 = ssub.s32 %s16, %s23
      %p93 = scmp.eq.s32.totalorder %s92, 0
      %s95 = sadd.s32 %s94, 1
      %s96 = scalar_select %p93, %s94, %s95
      %p99 = pneg %p93
      %p100 = scmp.eq.s32.totalorder %s16, 1
      %p101 = por %p99, %p100
      %p102 = scmp.ne.s32.totalorder %s94, %s97
      %p103 = scmp.eq.s32.totalorder %s16, 0
      %p104 = por %p102, %p103
      %p105 = scmp.ne.s32.totalorder %s94, %s97
      %p106 = scmp.eq.s32.totalorder %s21, 1
      %p107 = por %p105, %p106
      %p108 = scmp.ne.s32.totalorder %s97, %s98
      %p109 = scmp.eq.s32.totalorder %s21, 0
      %p110 = por %p108, %p109
      %p111 = scmp.ne.s32.totalorder %s97, %s98
      %p112 = scmp.eq.s32.totalorder %s22, 1
      %p113 = por %p111, %p112
      %p115 = scmp.ne.s32.totalorder %s98, %s114
      %p116 = scmp.eq.s32.totalorder %s22, 0
      %p117 = por %p115, %p116
      %p118 = scmp.le.s32.totalorder 1, %s16
      %p119 = scmp.lt.s32.totalorder %s16, 3
      %p120 = pnand %p118, %p119
      %p121 = pneg %p120
      // Predicated region
      $region9: #{tpu_custom_call.1} parent=5 // pred_check
        _
      $region10: #{tpu_custom_call.1} parent=5 // pred_check_branch
        %123 = sbr.rel (%p120) target = $region12
      $region11: #{tpu_custom_call.1} parent=5 // pred_region
        %s124 = ssub.s32 %s16, 1
        // Predicated region
        $region13: #{tpu_custom_call.1} parent=11 // pred_check
          %p125 = pneg %p63
        $region14: #{tpu_custom_call.1} parent=11 // pred_check_branch
          %127 = sbr.rel (%p125) target = $region16
        $region15: #{tpu_custom_call.1} parent=11 // pred_region
          %s129 = ssub.s32 64, 64
          %130 = vsyncadd [#allocation6], %s129
          %s132 = sshll.u32 [#allocation5], 4
          %s133 = int_to_ptr.vmem [resolvable:$true] %s132
          %135 = dma.hbm_to_vmem [thread:$0]  %s1, 64, %s133, [#allocation6]
        $region16: #{tpu_custom_call.1} parent=11 // pred_fallthru
          _
        // Predicated region
        $region17: #{tpu_custom_call.1} parent=11 // pred_check
          %p136 = pneg %p84
        $region18: #{tpu_custom_call.1} parent=11 // pred_check_branch
          %138 = sbr.rel (%p136) target = $region20
        $region19: #{tpu_custom_call.1} parent=11 // pred_region
          _
        $region20: #{tpu_custom_call.1} parent=11 // pred_fallthru
          _
      $region12: #{tpu_custom_call.1} parent=5 // pred_fallthru
        _
      %p139 = scmp.lt.s32.totalorder %s16, 2
      // Predicated region
      $region21: #{tpu_custom_call.1} parent=5 // pred_check
        %p140 = pneg %p139
      $region22: #{tpu_custom_call.1} parent=5 // pred_check_branch
        %142 = sbr.rel (%p140) target = $region24
      $region23: #{tpu_custom_call.1} parent=5 // pred_region
        // Predicated region
        $region25: #{tpu_custom_call.1} parent=23 // pred_check
          %p143 = pneg %p36
        $region26: #{tpu_custom_call.1} parent=23 // pred_check_branch
          %145 = sbr.rel (%p143) target = $region28
        $region27: #{tpu_custom_call.1} parent=23 // pred_region
          %s146 = sand.u32 %s26, 1
          %s147 = scalar_lea.sflag [#allocation3], %s146
          %s148 = sand.u32 %s26, 1
          %s149 = smul.addr %s148, 8
          %s150 = scalar_lea.vmem [#allocation2], %s149
          %s152 = ssub.s32 128, 128
          %153 = vsyncadd %s147, %s152
          %s154 = smul.addr %s16, 2
          %s155 = smul.addr %s154, 64
          %s156 = scalar_lea.hbm %s0, %s155
          %s158 = sshll.u32 %s150, 4
          %s159 = int_to_ptr.vmem [resolvable:$true] %s158
          %161 = dma.hbm_to_vmem [thread:$0]  %s156, 128, %s159, %s147
        $region28: #{tpu_custom_call.1} parent=23 // pred_fallthru
          _
      $region24: #{tpu_custom_call.1} parent=5 // pred_fallthru
        _
      %p162 = scmp.le.s32.totalorder 1, %s16
      %p163 = scmp.lt.s32.totalorder %s16, 3
      %p164 = pnand %p162, %p163
      %p165 = pneg %p164
      // Predicated region
      $region29: #{tpu_custom_call.1} parent=5 // pred_check
        _
      $region30: #{tpu_custom_call.1} parent=5 // pred_check_branch
        %167 = sbr.rel (%p164) target = $region32
      $region31: #{tpu_custom_call.1} parent=5 // pred_region
        %s168 = ssub.s32 %s16, 1
        %s169 = sand.u32 %s29, 1
        %s170 = scalar_lea.sflag [#allocation3], %s169
        %s171 = sand.u32 %s29, 1
        %s172 = smul.addr %s171, 8
        %s173 = scalar_lea.vmem [#allocation2], %s172
        // Predicated region
        $region33: #{tpu_custom_call.1} parent=31 // pred_check
          %p174 = pneg %p42
        $region34: #{tpu_custom_call.1} parent=31 // pred_check_branch
          %176 = sbr.rel (%p174) target = $region36
        $region35: #{tpu_custom_call.1} parent=31 // pred_region
          %177 = dma.done %s170, 128
        $region36: #{tpu_custom_call.1} parent=31 // pred_fallthru
          _
        // Predicated region
        $region37: #{tpu_custom_call.1} parent=31 // pred_check
          %p178 = pneg %p63
        $region38: #{tpu_custom_call.1} parent=31 // pred_check_branch
          %180 = sbr.rel (%p178) target = $region40
        $region39: #{tpu_custom_call.1} parent=31 // pred_region
          %181 = dma.done [#allocation6], 64
        $region40: #{tpu_custom_call.1} parent=31 // pred_fallthru
          _
        %s182 = sand.u32 %s29, 1
        %s183 = scalar_lea.sflag [#allocation3], %s182
        %s184 = sand.u32 %s29, 1
        %s185 = smul.addr %s184, 8
        %s186 = scalar_lea.vmem [#allocation2], %s185
        %p187 = pneg %p42
        %p188 = pneg %p39
        %p189 = pneg %p63
        %p190 = pneg %p60
        %p191 = pneg %p84
        %p192 = pneg %p81
        %p193 = pneg %p110
        %p194 = pneg %p107
        %s195 = sand.u32 %s97, 1
        %s196 = scalar_lea.sflag [#allocation4], %s195
        %s197 = sand.u32 %s97, 1
        %s198 = smul.addr %s197, 8
        %s199 = scalar_lea.vmem [#allocation7], %s198
        %v200 = vld [vmem:[%s173] sm:$0xff]
        %v202 = vcombine.high %v200, %v200
        %vm204 = vcmask 1043456
        %v205 = vsel %vm204, %v200, 0.0
        %v206 = vsel %vm204, %v202, 0.0
        %v207 = vadd.f32 %v205, %v206
        %208 = vadd.xlane.f32.xlu0 %v207
        %v209 = vpop.xlane.xlu0 %208
        %v210 = vld [vmem:[#allocation5] sm:$0xf]
        %v211 = vld [vmem:[%s2] sm:$0x1]
        %v213 = vlaneseq
        %v214 = vand.u32 %v213, 127
        %v215 = vlaneseq
        %v216 = vshrl.u32 %v215, 7
        %v217 = vsub.s32 %v214, %v216
        %v218 = vrot.slane %v209, %v217
        %vm219 = vcmask 31744
        %v220 = vsel %vm219, %v218, 0
        %v223 = vsel %vm204, %v210, 0
        %225 = vmatprep.subr.mxu0 0.0
        %226 = vmatpush1.msra.mxu0 0.0
        %227 = vmatprep.subr.mxu0 0.0
        %228 = vmatpush1.msra.mxu0 0.0
        %229 = vmatprep.subr.mxu0 0.0
        %230 = vmatpush1.msra.mxu0 0.0
        %231 = vmatprep.subr.mxu0 0.0
        %232 = vmatpush1.msra.mxu0 0.0
        %233 = vmatprep.subr.mxu0 0.0
        %234 = vmatpush1.msra.mxu0 0.0
        %235 = vmatprep.subr.mxu0 0.0
        %236 = vmatpush1.msra.mxu0 0.0
        %237 = vmatprep.subr.mxu0 0.0
        %238 = vmatpush1.msra.mxu0 0.0
        %239 = vmatprep.subr.mxu0 0.0
        %240 = vmatpush1.msra.mxu0 0.0
        %241 = vmatprep.subr.mxu0 0.0
        %242 = vmatpush1.msra.mxu0 0.0
        %243 = vmatprep.subr.mxu0 0.0
        %244 = vmatpush1.msra.mxu0 0.0
        %245 = vmatprep.subr.mxu0 0.0
        %246 = vmatpush1.msra.mxu0 0.0
        %247 = vmatprep.subr.mxu0 0.0
        %248 = vmatpush1.msra.mxu0 0.0
        %249 = vmatprep.subr.mxu0 0.0
        %250 = vmatpush1.msra.mxu0 0.0
        %251 = vmatprep.subr.mxu0 0.0
        %252 = vmatpush1.msra.mxu0 0.0
        %253 = vmatprep.subr.mxu0 0.0
        %254 = vmatpush1.msra.mxu0 0.0
        %255 = vmatprep.subr.mxu0 0.0
        %256 = vmatpush1.msra.mxu0 %v223
        %257 = vmatprep.subr.mxu0 0.0
        %258 = vmatpush2.msra.mxu0 0.0
        %259 = vmatprep.subr.mxu0 0.0
        %260 = vmatpush2.msra.mxu0 0.0
        %261 = vmatprep.subr.mxu0 0.0
        %262 = vmatpush2.msra.mxu0 0.0
        %263 = vmatprep.subr.mxu0 0.0
        %264 = vmatpush2.msra.mxu0 0.0
        %265 = vmatprep.subr.mxu0 0.0
        %266 = vmatpush2.msra.mxu0 0.0
        %267 = vmatprep.subr.mxu0 0.0
        %268 = vmatpush2.msra.mxu0 0.0
        %269 = vmatprep.subr.mxu0 0.0
        %270 = vmatpush2.msra.mxu0 0.0
        %271 = vmatprep.subr.mxu0 0.0
        %272 = vmatpush2.msra.mxu0 0.0
        %273 = vmatprep.subr.mxu0 0.0
        %274 = vmatpush2.msra.mxu0 0.0
        %275 = vmatprep.subr.mxu0 0.0
        %276 = vmatpush2.msra.mxu0 0.0
        %277 = vmatprep.subr.mxu0 0.0
        %278 = vmatpush2.msra.mxu0 0.0
        %279 = vmatprep.subr.mxu0 0.0
        %280 = vmatpush2.msra.mxu0 0.0
        %281 = vmatprep.subr.mxu0 0.0
        %282 = vmatpush2.msra.mxu0 0.0
        %283 = vmatprep.subr.mxu0 0.0
        %284 = vmatpush2.msra.mxu0 0.0
        %285 = vmatprep.subr.mxu0 0.0
        %286 = vmatpush2.msra.mxu0 0.0
        %287 = vmatprep.subr.mxu0 0.0
        %288 = vmatpush2.msra.mxu0 0.0
        %289 = vmatprep.mubr.f32.mxu0 0.0
        %290 = vmatmul.mubr.f32.gmra.mxu0 %v220
        %v291 = vpop.f32.mrf.mxu0
        %v292 = vadd.f32 %v211, %v291
        %v293 = vpop.f32.mrf.mxu0
        %294 = vdwg.mxu0
        %v295 = vxor.u32 %v292, 2147483648
        %v296 = vmul.f32 %v295, 1.442695
        %v297 = vpow.pop %v296
        %v298 = vadd.f32 %v297, 1.0
        %v299 = vrcp.pop %v298
        %v300 = vmul.f32 1.0, %v299
        %v301 = vlaneseq
        %v302 = vshrl.u32 %v301, 7
        %v303 = vsub.s32 0, %v302
        %v304 = vrot.slane %v300, %v303
        %306 = vbcast.lane.b32.xlu0 %v304, 256
        %v307 = vpop.permute.xlu0 %306
        %v310 = vunpack.c.l.s4 839922192
        %v311 = vunpack.c.0.s8 %v310
        %v312 = vlaneseq
        %v313 = vshrl.u32 %v312, 7
        %v314 = vsub.s32 %v311, %v313
        %v315 = vrot.slane %v307, %v314
        %v317 = vmul.f32 %v200, %v315
        %318 = vst [vmem:[%s199] sm:$0xff] %v317
        %s319 = sand.u32 %s97, 1
        %s320 = scalar_lea.sflag [#allocation4], %s319
        %s321 = sand.u32 %s97, 1
        %s322 = smul.addr %s321, 8
        %s323 = scalar_lea.vmem [#allocation7], %s322
        // Predicated region
        $region41: #{tpu_custom_call.1} parent=31 // pred_check
          %p324 = pneg %p107
        $region42: #{tpu_custom_call.1} parent=31 // pred_check_branch
          %326 = sbr.rel (%p324) target = $region44
        $region43: #{tpu_custom_call.1} parent=31 // pred_region
          %s328 = ssub.s32 128, 128
          %329 = vsyncadd %s320, %s328
          %s330 = smul.addr %s21, 2
          %s331 = smul.addr %s330, 64
          %s332 = scalar_lea.hbm %s3, %s331
          %s334 = sshll.u32 %s323, 4
          %s335 = int_to_ptr.vmem [resolvable:$true] %s334
          %337 = dma.vmem_to_hbm [thread:$0]  %s335, 128, %s332, %s320
        $region44: #{tpu_custom_call.1} parent=31 // pred_fallthru
          _
      $region32: #{tpu_custom_call.1} parent=5 // pred_fallthru
        _
      %p338 = scmp.le.s32.totalorder 2, %s16
      // Predicated region
      $region45: #{tpu_custom_call.1} parent=5 // pred_check
        %p339 = pneg %p338
      $region46: #{tpu_custom_call.1} parent=5 // pred_check_branch
        %341 = sbr.rel (%p339) target = $region48
      $region47: #{tpu_custom_call.1} parent=5 // pred_region
        %s342 = ssub.s32 %s16, 2
        // Predicated region
        $region49: #{tpu_custom_call.1} parent=47 // pred_check
          %p343 = pneg %p113
        $region50: #{tpu_custom_call.1} parent=47 // pred_check_branch
          %345 = sbr.rel (%p343) target = $region52
        $region51: #{tpu_custom_call.1} parent=47 // pred_region
          %s346 = sand.u32 %s98, 1
          %s347 = scalar_lea.sflag [#allocation4], %s346
          %s348 = sand.u32 %s98, 1
          %s349 = smul.addr %s348, 8
          %s350 = scalar_lea.vmem [#allocation7], %s349
          %351 = dma.done %s347, 128
        $region52: #{tpu_custom_call.1} parent=47 // pred_fallthru
          _
      $region48: #{tpu_custom_call.1} parent=5 // pred_fallthru
        _
    $region6: #{tpu_custom_call.1} parent=1 // loop_footer
      %s20 = sadd.s32 1, %s16
    $region7: #{tpu_custom_call.1} parent=1 // loop_footer_branch
      %15 = sbr.rel target = $region3
    $region8: #{tpu_custom_call.1} parent=1 // loop_exit
      _
    %352 = vsyncpa [#allocation3], 1
    %s353 = scalar_lea.sflag [#allocation3], 1
    %354 = vsyncpa %s353, 1
    %355 = vsyncpa [#allocation6], 1
    %356 = vsyncpa [#allocation4], 1
    %s357 = scalar_lea.sflag [#allocation4], 1
    %358 = vsyncpa %s357, 1

</llo_original>
